<compile_context>
chip_gen: v5e
topology: v5e:2x2
jax: 0.10.0
libtpu: 0.0.40
codegen_flags: <defaults>
</compile_context>

<pallas_src>
import jax
import jax.numpy as jnp
from jax import lax
from jax.experimental import pallas as pl
from jax.experimental.pallas import tpu as pltpu

_LANES = 128           # lane width: vocab padded to a multiple of this
_MAX_BATCH_TILE = 128  # cap on the batch (sublane) tile
_NEG_INF = -1e30       # bias fill for padded vocab lanes (-> exp() == 0 under softmax)


def _round_up(x, m):
    return (x + m - 1) // m * m


def torch_model_kernel(tok_ref, rm_ref, w_ref, b_ref, out_ref):
    # tok_ref : (TB, S)     int32, VMEM   token ids for this batch tile
    # rm_ref  : (V,)        f32,   SMEM   per-row mean of the embedding table
    # w_ref   : (V_pad, D)  f32,   VMEM   linear weight (pad rows = 0)
    # b_ref   : (1, V_pad)  f32,   VMEM   linear bias (pad lanes = -1e30)
    # out_ref : (TB, V_pad) f32,   VMEM   softmax probabilities
    tok = tok_ref[...]                      # (TB, S) int32, one vector load
    n_vocab = rm_ref.shape[0]               # static Python int

    # ---- Embedding + AvgPool1d(D): pooled[b, s] = row_mean[tok[b, s]] --------
    # Vectorized vocab-select gather: V iterations, each one compare+select on
    # the whole (TB, S) tile (VPU) against a scalar SMEM read of row_mean[v].
    # No one-hot over V, no (B, S, V) temporaries, no per-element scalar loop.
    def pool_body(v, acc):
        return jnp.where(tok == v, rm_ref[v], acc)

    pooled = lax.fori_loop(0, n_vocab, pool_body,
                           jnp.zeros(tok.shape, jnp.float32),
                           unroll=(n_vocab <= 256))

    # ---- Linear: pooled @ W.T + bias  (MXU, bf16 operands, f32 accumulate) ---
    # Contract on dim 1 of both operands: no transposed copy of W anywhere.
    logits = lax.dot_general(
        pooled.astype(jnp.bfloat16),
        w_ref[...].astype(jnp.bfloat16),
        dimension_numbers=(((1,), (1,)), ((), ())),
        preferred_element_type=jnp.float32,
    ) + b_ref[...]                          # (TB, V_pad), f32

    # ---- softmax over the lane-dense vocab axis (f32, numerically stable) ----
    m = jnp.max(logits, axis=1, keepdims=True)
    e = jnp.exp(logits - m)                 # padded lanes: exp(-1e30 - m) == 0
    denom = jnp.sum(e, axis=1, keepdims=True)
    out_ref[...] = e * pl.reciprocal(denom, approx=True)


def torch_model_forward(x, emb_table, w, b):
    """Eval-mode forward of TorchModel.

    x         : (B, S) int32 token ids
    emb_table : (V, D) f32   nn.Embedding weight
    w         : (V, D) f32   nn.Linear weight
    b         : (V,)   f32   nn.Linear bias
    returns   : (B, V) f32 softmax probabilities (softmax over dim=1)
    """
    B, S = x.shape
    V, D = emb_table.shape
    if S != D:
        raise ValueError("TorchModel semantics require seq_len == vector_dim")

    # nn.Embedding would raise on out-of-range ids; clamp instead of OOB reads.
    x = jnp.clip(x.astype(jnp.int32), 0, V - 1)
    emb_table = emb_table.astype(jnp.float32)
    w = w.astype(jnp.float32)
    b = b.astype(jnp.float32)

    # Input-independent precompute (Embedding -> AvgPool1d(D) == per-row mean).
    row_mean = jnp.mean(emb_table, axis=1)                          # (V,)

    V_pad = _round_up(V, _LANES)
    batch_tile = min(_round_up(max(B, 8), 8), _MAX_BATCH_TILE)      # mult. of 8 sublanes
    B_pad = _round_up(B, batch_tile)

    # Lane-dense padding of the vocab axis: zero weight rows + -inf bias lanes
    # so the padded lanes vanish under softmax; batch padded with token id 0.
    w_pad = jnp.zeros((V_pad, D), jnp.float32).at[:V, :].set(w)
    b_pad = jnp.full((1, V_pad), _NEG_INF, jnp.float32).at[0, :V].set(b)
    x_pad = jnp.zeros((B_pad, S), jnp.int32).at[:B, :].set(x)

    grid = (B_pad // batch_tile,)

    out = pl.pallas_call(
        torch_model_kernel,
        out_shape=jax.ShapeDtypeStruct((B_pad, V_pad), jnp.float32),
        grid_spec=pltpu.PrefetchScalarGridSpec(
            num_scalar_prefetch=0,
            grid=grid,
            in_specs=[
                pl.BlockSpec((batch_tile, S), lambda i: (i, 0)),       # token ids
                pl.BlockSpec(memory_space=pltpu.MemorySpace.SMEM),     # row_mean (V,)
                pl.BlockSpec((V_pad, D), lambda i: (0, 0)),            # W, resident
                pl.BlockSpec((1, V_pad), lambda i: (0, 0)),            # bias, resident
            ],
            out_specs=pl.BlockSpec((batch_tile, V_pad), lambda i: (i, 0)),
        ),
        compiler_params=pltpu.CompilerParams(
            dimension_semantics=("parallel",),       # batch tiles across TCs (v7x)
            vmem_limit_bytes=32 * 1024 * 1024,       # explicit; fits v5e/v6e/v7x
        ),
    )(x_pad, row_mean, w_pad, b_pad)

    return out[:B, :V]


if __name__ == "__main__":
    key = jax.random.PRNGKey(0)
    V = 16          # len(vocab)
    D = 32          # vector_dim
    B = 2           # batch
    S = D           # seq_len must equal vector_dim (module semantics)

    k1, k2, k3, k4 = jax.random.split(key, 4)
    x = jax.random.randint(k1, (B, S), 0, V, dtype=jnp.int32)
    emb_table = jax.random.normal(k2, (V, D), dtype=jnp.float32)
    w = jax.random.normal(k3, (V, D), dtype=jnp.float32) * 0.1
    b = jax.random.normal(k4, (V,), dtype=jnp.float32) * 0.1

    out = jax.block_until_ready(torch_model_forward(x, emb_table, w, b))

    # Pure-JAX reference of the eval-mode forward.
    pooled_ref = jnp.mean(emb_table, axis=1)[x]                  # (B, S) == (B, D)
    logits_ref = pooled_ref @ w.T + b
    ref = jax.nn.softmax(logits_ref, axis=1)

    assert out.shape == (B, V)
    # Tolerances account for bf16 MXU operands + approx reciprocal in the kernel.
    assert jnp.allclose(jnp.sum(out, axis=1), 1.0, atol=1e-3)
    assert jnp.allclose(out, ref, atol=2e-2)
    print("KERNEL_OK")
</pallas_src>

<mosaic_0001>
module attributes {stable_mosaic.version = 11 : i64} {
  func.func @torch_model_kernel(%arg0: i32, %arg1: memref<8x32xi32, #tpu.memory_space<vmem>>, %arg2: memref<16xf32, #tpu.memory_space<smem>>, %arg3: memref<128x32xf32, #tpu.memory_space<vmem>>, %arg4: memref<1x128xf32, #tpu.memory_space<vmem>>, %arg5: memref<8x128xf32, #tpu.memory_space<vmem>>) attributes {dimension_semantics = [#tpu.dimension_semantics<parallel>], iteration_bounds = array<i64: 1>, scalar_prefetch = 0 : i64, scratch_operands = 0 : i64, tpu.core_type = #tpu.core_type<tc>, window_params = [{transform_indices = @transform_0, window_bounds = array<i64: 8, 32>}, {transform_indices = @transform_1, window_bounds = array<i64: 16>}, {pipeline_mode = #tpu.pipeline_mode<synchronous>, transform_indices = @transform_2, window_bounds = array<i64: 128, 32>}, {pipeline_mode = #tpu.pipeline_mode<synchronous>, transform_indices = @transform_3, window_bounds = array<i64: 1, 128>}, {transform_indices = @transform_4, window_bounds = array<i64: 8, 128>}]} {
    %c0 = arith.constant 0 : index
    %c0_0 = arith.constant 0 : index
    %0 = vector.load %arg1[%c0, %c0_0] : memref<8x32xi32, #tpu.memory_space<vmem>>, vector<8x32xi32>
    %cst = arith.constant 0.000000e+00 : f32
    %1 = vector.broadcast %cst : f32 to vector<8x32xf32>
    %c0_i32 = arith.constant 0 : i32
    %2 = vector.broadcast %c0_i32 : i32 to vector<8x32xi32>
    %3 = arith.cmpi eq, %0, %2 : vector<8x32xi32>
    %4 = arith.index_cast %c0_i32 : i32 to index
    %5 = memref.load %arg2[%4] : memref<16xf32, #tpu.memory_space<smem>>
    %6 = vector.broadcast %5 : f32 to vector<8x32xf32>
    %7 = arith.select %3, %6, %1 : vector<8x32xi1>, vector<8x32xf32>
    %c1_i32 = arith.constant 1 : i32
    %8 = vector.broadcast %c1_i32 : i32 to vector<8x32xi32>
    %9 = arith.cmpi eq, %0, %8 : vector<8x32xi32>
    %10 = arith.index_cast %c1_i32 : i32 to index
    %11 = memref.load %arg2[%10] : memref<16xf32, #tpu.memory_space<smem>>
    %12 = vector.broadcast %11 : f32 to vector<8x32xf32>
    %13 = arith.select %9, %12, %7 : vector<8x32xi1>, vector<8x32xf32>
    %c2_i32 = arith.constant 2 : i32
    %14 = vector.broadcast %c2_i32 : i32 to vector<8x32xi32>
    %15 = arith.cmpi eq, %0, %14 : vector<8x32xi32>
    %16 = arith.index_cast %c2_i32 : i32 to index
    %17 = memref.load %arg2[%16] : memref<16xf32, #tpu.memory_space<smem>>
    %18 = vector.broadcast %17 : f32 to vector<8x32xf32>
    %19 = arith.select %15, %18, %13 : vector<8x32xi1>, vector<8x32xf32>
    %c3_i32 = arith.constant 3 : i32
    %20 = vector.broadcast %c3_i32 : i32 to vector<8x32xi32>
    %21 = arith.cmpi eq, %0, %20 : vector<8x32xi32>
    %22 = arith.index_cast %c3_i32 : i32 to index
    %23 = memref.load %arg2[%22] : memref<16xf32, #tpu.memory_space<smem>>
    %24 = vector.broadcast %23 : f32 to vector<8x32xf32>
    %25 = arith.select %21, %24, %19 : vector<8x32xi1>, vector<8x32xf32>
    %c4_i32 = arith.constant 4 : i32
    %26 = vector.broadcast %c4_i32 : i32 to vector<8x32xi32>
    %27 = arith.cmpi eq, %0, %26 : vector<8x32xi32>
    %28 = arith.index_cast %c4_i32 : i32 to index
    %29 = memref.load %arg2[%28] : memref<16xf32, #tpu.memory_space<smem>>
    %30 = vector.broadcast %29 : f32 to vector<8x32xf32>
    %31 = arith.select %27, %30, %25 : vector<8x32xi1>, vector<8x32xf32>
    %c5_i32 = arith.constant 5 : i32
    %32 = vector.broadcast %c5_i32 : i32 to vector<8x32xi32>
    %33 = arith.cmpi eq, %0, %32 : vector<8x32xi32>
    %34 = arith.index_cast %c5_i32 : i32 to index
    %35 = memref.load %arg2[%34] : memref<16xf32, #tpu.memory_space<smem>>
    %36 = vector.broadcast %35 : f32 to vector<8x32xf32>
    %37 = arith.select %33, %36, %31 : vector<8x32xi1>, vector<8x32xf32>
    %c6_i32 = arith.constant 6 : i32
    %38 = vector.broadcast %c6_i32 : i32 to vector<8x32xi32>
    %39 = arith.cmpi eq, %0, %38 : vector<8x32xi32>
    %40 = arith.index_cast %c6_i32 : i32 to index
    %41 = memref.load %arg2[%40] : memref<16xf32, #tpu.memory_space<smem>>
    %42 = vector.broadcast %41 : f32 to vector<8x32xf32>
    %43 = arith.select %39, %42, %37 : vector<8x32xi1>, vector<8x32xf32>
    %c7_i32 = arith.constant 7 : i32
    %44 = vector.broadcast %c7_i32 : i32 to vector<8x32xi32>
    %45 = arith.cmpi eq, %0, %44 : vector<8x32xi32>
    %46 = arith.index_cast %c7_i32 : i32 to index
    %47 = memref.load %arg2[%46] : memref<16xf32, #tpu.memory_space<smem>>
    %48 = vector.broadcast %47 : f32 to vector<8x32xf32>
    %49 = arith.select %45, %48, %43 : vector<8x32xi1>, vector<8x32xf32>
    %c8_i32 = arith.constant 8 : i32
    %50 = vector.broadcast %c8_i32 : i32 to vector<8x32xi32>
    %51 = arith.cmpi eq, %0, %50 : vector<8x32xi32>
    %52 = arith.index_cast %c8_i32 : i32 to index
    %53 = memref.load %arg2[%52] : memref<16xf32, #tpu.memory_space<smem>>
    %54 = vector.broadcast %53 : f32 to vector<8x32xf32>
    %55 = arith.select %51, %54, %49 : vector<8x32xi1>, vector<8x32xf32>
    %c9_i32 = arith.constant 9 : i32
    %56 = vector.broadcast %c9_i32 : i32 to vector<8x32xi32>
    %57 = arith.cmpi eq, %0, %56 : vector<8x32xi32>
    %58 = arith.index_cast %c9_i32 : i32 to index
    %59 = memref.load %arg2[%58] : memref<16xf32, #tpu.memory_space<smem>>
    %60 = vector.broadcast %59 : f32 to vector<8x32xf32>
    %61 = arith.select %57, %60, %55 : vector<8x32xi1>, vector<8x32xf32>
    %c10_i32 = arith.constant 10 : i32
    %62 = vector.broadcast %c10_i32 : i32 to vector<8x32xi32>
    %63 = arith.cmpi eq, %0, %62 : vector<8x32xi32>
    %64 = arith.index_cast %c10_i32 : i32 to index
    %65 = memref.load %arg2[%64] : memref<16xf32, #tpu.memory_space<smem>>
    %66 = vector.broadcast %65 : f32 to vector<8x32xf32>
    %67 = arith.select %63, %66, %61 : vector<8x32xi1>, vector<8x32xf32>
    %c11_i32 = arith.constant 11 : i32
    %68 = vector.broadcast %c11_i32 : i32 to vector<8x32xi32>
    %69 = arith.cmpi eq, %0, %68 : vector<8x32xi32>
    %70 = arith.index_cast %c11_i32 : i32 to index
    %71 = memref.load %arg2[%70] : memref<16xf32, #tpu.memory_space<smem>>
    %72 = vector.broadcast %71 : f32 to vector<8x32xf32>
    %73 = arith.select %69, %72, %67 : vector<8x32xi1>, vector<8x32xf32>
    %c12_i32 = arith.constant 12 : i32
    %74 = vector.broadcast %c12_i32 : i32 to vector<8x32xi32>
    %75 = arith.cmpi eq, %0, %74 : vector<8x32xi32>
    %76 = arith.index_cast %c12_i32 : i32 to index
    %77 = memref.load %arg2[%76] : memref<16xf32, #tpu.memory_space<smem>>
    %78 = vector.broadcast %77 : f32 to vector<8x32xf32>
    %79 = arith.select %75, %78, %73 : vector<8x32xi1>, vector<8x32xf32>
    %c13_i32 = arith.constant 13 : i32
    %80 = vector.broadcast %c13_i32 : i32 to vector<8x32xi32>
    %81 = arith.cmpi eq, %0, %80 : vector<8x32xi32>
    %82 = arith.index_cast %c13_i32 : i32 to index
    %83 = memref.load %arg2[%82] : memref<16xf32, #tpu.memory_space<smem>>
    %84 = vector.broadcast %83 : f32 to vector<8x32xf32>
    %85 = arith.select %81, %84, %79 : vector<8x32xi1>, vector<8x32xf32>
    %c14_i32 = arith.constant 14 : i32
    %86 = vector.broadcast %c14_i32 : i32 to vector<8x32xi32>
    %87 = arith.cmpi eq, %0, %86 : vector<8x32xi32>
    %88 = arith.index_cast %c14_i32 : i32 to index
    %89 = memref.load %arg2[%88] : memref<16xf32, #tpu.memory_space<smem>>
    %90 = vector.broadcast %89 : f32 to vector<8x32xf32>
    %91 = arith.select %87, %90, %85 : vector<8x32xi1>, vector<8x32xf32>
    %c15_i32 = arith.constant 15 : i32
    %92 = vector.broadcast %c15_i32 : i32 to vector<8x32xi32>
    %93 = arith.cmpi eq, %0, %92 : vector<8x32xi32>
    %94 = arith.index_cast %c15_i32 : i32 to index
    %95 = memref.load %arg2[%94] : memref<16xf32, #tpu.memory_space<smem>>
    %96 = vector.broadcast %95 : f32 to vector<8x32xf32>
    %97 = arith.select %93, %96, %91 : vector<8x32xi1>, vector<8x32xf32>
    %c16_i32 = arith.constant 16 : i32
    %98 = arith.truncf %97 : vector<8x32xf32> to vector<8x32xbf16>
    %c0_1 = arith.constant 0 : index
    %c0_2 = arith.constant 0 : index
    %99 = vector.load %arg3[%c0_1, %c0_2] : memref<128x32xf32, #tpu.memory_space<vmem>>, vector<128x32xf32>
    %100 = arith.truncf %99 : vector<128x32xf32> to vector<128x32xbf16>
    %cst_3 = arith.constant dense<0.000000e+00> : vector<8x128xf32>
    %101 = tpu.matmul %98, %100, %cst_3 {dimension_numbers = #tpu.dot_dimension_numbers<[1], [1], [0], [0], [0, 0, 1, 0], [], []>} : vector<8x32xbf16>, vector<128x32xbf16>, vector<8x128xf32> -> vector<8x128xf32>
    %c0_4 = arith.constant 0 : index
    %c0_5 = arith.constant 0 : index
    %102 = vector.load %arg4[%c0_4, %c0_5] : memref<1x128xf32, #tpu.memory_space<vmem>>, vector<1x128xf32>
    %103 = vector.broadcast %102 : vector<1x128xf32> to vector<8x128xf32>
    %104 = arith.addf %101, %103 : vector<8x128xf32>
    %cst_6 = arith.constant dense<0xFF800000> : vector<8xf32>
    %105 = vector.multi_reduction <maximumf>, %104, %cst_6 [1] : vector<8x128xf32> to vector<8xf32>
    %106 = vector.shape_cast %105 : vector<8xf32> to vector<8x1xf32>
    %107 = vector.broadcast %106 : vector<8x1xf32> to vector<8x128xf32>
    %108 = arith.subf %104, %107 : vector<8x128xf32>
    %109 = math.exp %108 : vector<8x128xf32>
    %cst_7 = arith.constant dense<0.000000e+00> : vector<8xf32>
    %110 = vector.multi_reduction <add>, %109, %cst_7 [1] : vector<8x128xf32> to vector<8xf32>
    %111 = vector.shape_cast %110 : vector<8xf32> to vector<8x1xf32>
    %112 = tpu.reciprocal %111 {approx = true} : vector<8x1xf32> -> vector<8x1xf32>
    %113 = vector.broadcast %112 : vector<8x1xf32> to vector<8x128xf32>
    %114 = arith.mulf %109, %113 : vector<8x128xf32>
    %c0_8 = arith.constant 0 : index
    %c0_9 = arith.constant 0 : index
    %115 = vector.load %arg5[%c0_8, %c0_9] : memref<8x128xf32, #tpu.memory_space<vmem>>, vector<8x128xf32>
    tpu.vector_store %arg5[%c0_8, %c0_9], %114 {strides = array<i32>} : memref<8x128xf32, #tpu.memory_space<vmem>>, vector<8x128xf32>,
    return
  }
  func.func @transform_0(%arg0: i32) -> (i32, i32) {
    %c0_i32 = arith.constant 0 : i32
    %c0_i32_0 = arith.constant 0 : i32
    return %arg0, %c0_i32 : i32, i32
  }
  func.func @transform_1(%arg0: i32) -> i32 {
    %c0_i32 = arith.constant 0 : i32
    %c0_i32_0 = arith.constant 0 : i32
    return %c0_i32 : i32
  }
  func.func @transform_2(%arg0: i32) -> (i32, i32) {
    %c0_i32 = arith.constant 0 : i32
    %c0_i32_0 = arith.constant 0 : i32
    %c0_i32_1 = arith.constant 0 : i32
    return %c0_i32, %c0_i32_0 : i32, i32
  }
  func.func @transform_3(%arg0: i32) -> (i32, i32) {
    %c0_i32 = arith.constant 0 : i32
    %c0_i32_0 = arith.constant 0 : i32
    %c0_i32_1 = arith.constant 0 : i32
    return %c0_i32, %c0_i32_0 : i32, i32
  }
  func.func @transform_4(%arg0: i32) -> (i32, i32) {
    %c0_i32 = arith.constant 0 : i32
    %c0_i32_0 = arith.constant 0 : i32
    return %arg0, %c0_i32 : i32, i32
  }
}

</mosaic_0001>

<llo_original>
// kernel: tpu_custom_call.1
$region0: #{tpu_custom_call.1}
  #allocation0 [shape = 'u32[]', space=smem, size = 0x4, offset = 0x4, fixed_abs, tag = 'smem constant byte address 0x4 - core index']
  #allocation1 [shape = 'u32[72,128]{1,0:T(1,128)}', space=vmem, size = 0x9000, scoped, tag = 'internal scratch']
  %s0 = inlined_call_operand.vmem [shape: s32[8,32], index: 0, kind: input, shape index: {}]
  %s1 = inlined_call_operand.vmem [shape: f32[16], index: 1, kind: input, shape index: {}]
  %s2 = inlined_call_operand.vmem [shape: f32[128,32], index: 2, kind: input, shape index: {}]
  %s3 = inlined_call_operand.vmem [shape: f32[1,128], index: 3, kind: input, shape index: {}]
  %s4 = inlined_call_operand.hbm [shape: f32[8,128], index: 4, kind: output, shape index: {}]
  %s5 = sld [smem:[#allocation0]]
  $region30: #{tpu_custom_call.1} parent=0
    _
  %s7 = ssub.s32 1, %s5
  %s8 = scalar_select 0, %s7, %s5
  $region1: #{tpu_custom_call.1} parent=0
    #allocation2 [shape = 'u8[512]{0}', space=smem, size = 0x200, scoped, tag = 'input window, operand 1, single buffered']
    #allocation3 [shape = 's32[1]{0}', space=sflag, size = 0x4, scoped, tag = 'scoped memory for tpu_custom_call.1']
    #allocation4 [shape = 's32[1]{0}', space=sflag, size = 0x4, scoped, tag = 'scoped memory for tpu_custom_call.1']
    #allocation5 [shape = 'u8[4096]{0}', space=vmem, size = 0x1000, scoped, tag = 'output window, operand 0, single buffered']
    %9 = vsyncpa [#allocation4], 0
    %10 = vsyncpa [#allocation3], 0
    // Predicated region
    $region2: #{tpu_custom_call.1} parent=1 // pred_check
      _
    $region3: #{tpu_custom_call.1} parent=1 // pred_check_branch
      %12 = sbr.rel (0) target = $region5
    $region4: #{tpu_custom_call.1} parent=1 // pred_region
      _
    $region5: #{tpu_custom_call.1} parent=1 // pred_fallthru
      _
    // Predicated region
    $region6: #{tpu_custom_call.1} parent=1 // pred_check
      _
    $region7: #{tpu_custom_call.1} parent=1 // pred_check_branch
      %14 = sbr.rel (0) target = $region9
    $region8: #{tpu_custom_call.1} parent=1 // pred_region
      %16 = vsyncadd [#allocation4], 0
      %s18 = sshll.u32 %s1, 4
      %s19 = int_to_ptr.vmem [resolvable:$true] %s18
      %21 = dma.vmem_to_smem %s19, 16, [#allocation2], [#allocation4]
    $region9: #{tpu_custom_call.1} parent=1 // pred_fallthru
      _
    // Predicated region
    $region10: #{tpu_custom_call.1} parent=1 // pred_check
      _
    $region11: #{tpu_custom_call.1} parent=1 // pred_check_branch
      %23 = sbr.rel (0) target = $region13
    $region12: #{tpu_custom_call.1} parent=1 // pred_region
      _
    $region13: #{tpu_custom_call.1} parent=1 // pred_fallthru
      _
    // Predicated region
    $region14: #{tpu_custom_call.1} parent=1 // pred_check
      _
    $region15: #{tpu_custom_call.1} parent=1 // pred_check_branch
      %25 = sbr.rel (0) target = $region17
    $region16: #{tpu_custom_call.1} parent=1 // pred_region
      _
    $region17: #{tpu_custom_call.1} parent=1 // pred_fallthru
      _
    // Predicated region
    $region18: #{tpu_custom_call.1} parent=1 // pred_check
      _
    $region19: #{tpu_custom_call.1} parent=1 // pred_check_branch
      %27 = sbr.rel (0) target = $region21
    $region20: #{tpu_custom_call.1} parent=1 // pred_region
      %29 = dma.done [#allocation4], 16
    $region21: #{tpu_custom_call.1} parent=1 // pred_fallthru
      _
    %30 = sfence
    %v31 = vld [vmem:[%s0] sm:$0xff]
    %vm32 = vcmp.eq.s32.totalorder %v31, 0
    %s33 = sld [smem:[#allocation2]]
    %v34 = vstv %s33
    %v35 = vsel %vm32, %v34, 0.0
    %vm36 = vcmp.eq.s32.totalorder %v31, 1
    %s37 = sld [smem:[#allocation2 + $0x1]]
    %v38 = vstv %s37
    %v39 = vsel %vm36, %v38, %v35
    %vm40 = vcmp.eq.s32.totalorder %v31, 2
    %s41 = sld [smem:[#allocation2 + $0x2]]
    %v42 = vstv %s41
    %v43 = vsel %vm40, %v42, %v39
    %vm44 = vcmp.eq.s32.totalorder %v31, 3
    %s45 = sld [smem:[#allocation2 + $0x3]]
    %v46 = vstv %s45
    %v47 = vsel %vm44, %v46, %v43
    %vm48 = vcmp.eq.s32.totalorder %v31, 4
    %s49 = sld [smem:[#allocation2 + $0x4]]
    %v50 = vstv %s49
    %v51 = vsel %vm48, %v50, %v47
    %vm52 = vcmp.eq.s32.totalorder %v31, 5
    %s53 = sld [smem:[#allocation2 + $0x5]]
    %v54 = vstv %s53
    %v55 = vsel %vm52, %v54, %v51
    %vm56 = vcmp.eq.s32.totalorder %v31, 6
    %s57 = sld [smem:[#allocation2 + $0x6]]
    %v58 = vstv %s57
    %v59 = vsel %vm56, %v58, %v55
    %vm60 = vcmp.eq.s32.totalorder %v31, 7
    %s61 = sld [smem:[#allocation2 + $0x7]]
    %v62 = vstv %s61
    %v63 = vsel %vm60, %v62, %v59
    %vm64 = vcmp.eq.s32.totalorder %v31, 8
    %s65 = sld [smem:[#allocation2 + $0x8]]
    %v66 = vstv %s65
    %v67 = vsel %vm64, %v66, %v63
    %vm68 = vcmp.eq.s32.totalorder %v31, 9
    %s69 = sld [smem:[#allocation2 + $0x9]]
    %v70 = vstv %s69
    %v71 = vsel %vm68, %v70, %v67
    %vm72 = vcmp.eq.s32.totalorder %v31, 10
    %s73 = sld [smem:[#allocation2 + $0xa]]
    %v74 = vstv %s73
    %v75 = vsel %vm72, %v74, %v71
    %vm76 = vcmp.eq.s32.totalorder %v31, 11
    %s77 = sld [smem:[#allocation2 + $0xb]]
    %v78 = vstv %s77
    %v79 = vsel %vm76, %v78, %v75
    %vm80 = vcmp.eq.s32.totalorder %v31, 12
    %s81 = sld [smem:[#allocation2 + $0xc]]
    %v82 = vstv %s81
    %v83 = vsel %vm80, %v82, %v79
    %vm84 = vcmp.eq.s32.totalorder %v31, 13
    %s85 = sld [smem:[#allocation2 + $0xd]]
    %v86 = vstv %s85
    %v87 = vsel %vm84, %v86, %v83
    %vm88 = vcmp.eq.s32.totalorder %v31, 14
    %s89 = sld [smem:[#allocation2 + $0xe]]
    %v90 = vstv %s89
    %v91 = vsel %vm88, %v90, %v87
    %vm92 = vcmp.eq.s32.totalorder %v31, 15
    %s93 = sld [smem:[#allocation2 + $0xf]]
    %v94 = vstv %s93
    %v95 = vsel %vm92, %v94, %v91
    %v96 = vpack.c.bf16 %v95, %v95
    %v97 = vld [vmem:[%s2] sm:$0xff]
    %v98 = vld [vmem:[%s2 + $0x8] sm:$0xff]
    %v99 = vld [vmem:[%s2 + $0x10] sm:$0xff]
    %v100 = vld [vmem:[%s2 + $0x18] sm:$0xff]
    %v101 = vld [vmem:[%s2 + $0x20] sm:$0xff]
    %v102 = vld [vmem:[%s2 + $0x28] sm:$0xff]
    %v103 = vld [vmem:[%s2 + $0x30] sm:$0xff]
    %v104 = vld [vmem:[%s2 + $0x38] sm:$0xff]
    %v105 = vld [vmem:[%s2 + $0x40] sm:$0xff]
    %v106 = vld [vmem:[%s2 + $0x48] sm:$0xff]
    %v107 = vld [vmem:[%s2 + $0x50] sm:$0xff]
    %v108 = vld [vmem:[%s2 + $0x58] sm:$0xff]
    %v109 = vld [vmem:[%s2 + $0x60] sm:$0xff]
    %v110 = vld [vmem:[%s2 + $0x68] sm:$0xff]
    %v111 = vld [vmem:[%s2 + $0x70] sm:$0xff]
    %v112 = vld [vmem:[%s2 + $0x78] sm:$0xff]
    %v113 = vpack.c.bf16 %v98, %v97
    %v114 = vpack.c.bf16 %v100, %v99
    %v115 = vpack.c.bf16 %v102, %v101
    %v116 = vpack.c.bf16 %v104, %v103
    %v117 = vpack.c.bf16 %v106, %v105
    %v118 = vpack.c.bf16 %v108, %v107
    %v119 = vpack.c.bf16 %v110, %v109
    %v120 = vpack.c.bf16 %v112, %v111
    %v121 = vld [vmem:[%s3] sm:$0x1]
    %v123 = vperm.slane %v121, 0
    %vm125 = vcmask 261120
    %v127 = vsel %vm125, %v96, 0
    %v130 = vsel %vm125, %v113, 0
    %v133 = vsel %vm125, %v114, 0
    %v136 = vsel %vm125, %v115, 0
    %v139 = vsel %vm125, %v116, 0
    %v142 = vsel %vm125, %v117, 0
    %v145 = vsel %vm125, %v118, 0
    %v148 = vsel %vm125, %v119, 0
    %v151 = vsel %vm125, %v120, 0
    %153 = vmatpush.bf16.xpose.msra.mxu0 %v151
    %154 = vmatpush.bf16.xpose.msra.mxu0 %v148
    %155 = vmatpush.bf16.xpose.msra.mxu0 %v145
    %156 = vmatpush.bf16.xpose.msra.mxu0 %v142
    %157 = vmatpush.bf16.xpose.msra.mxu0 %v139
    %158 = vmatpush.bf16.xpose.msra.mxu0 %v136
    %159 = vmatpush.bf16.xpose.msra.mxu0 %v133
    %160 = vmatpush.bf16.xpose.msra.mxu0 %v130
    %161 = vmatmul.bf16.gmra.mxu0 %v127
    %v162 = vpop.f32.mrf.mxu0
    %v163 = vadd.f32 %v123, %v162
    %v164 = vpop.f32.mrf.mxu0
    %165 = vdwg.mxu0
    %166 = vmax.xlane.f32.xlu0 %v163
    %v167 = vpop.xlane.xlu0 %166
    %v168 = vsub.f32 %v163, %v167
    %v169 = vmul.f32 %v168, 1.442695
    %v170 = vpow.pop %v169
    %171 = vadd.xlane.f32.xlu0 %v170
    %v172 = vpop.xlane.xlu0 %171
    %v173 = vrcp.pop %v172
    %v174 = vmul.f32 %v170, %v173
    %175 = vst [vmem:[#allocation5] sm:$0xff] %v174
    // Predicated region
    $region22: #{tpu_custom_call.1} parent=1 // pred_check
      _
    $region23: #{tpu_custom_call.1} parent=1 // pred_check_branch
      %177 = sbr.rel (0) target = $region25
    $region24: #{tpu_custom_call.1} parent=1 // pred_region
      %179 = vsyncadd [#allocation3], 0
      %s181 = sshll.u32 [#allocation5], 4
      %s182 = int_to_ptr.vmem [resolvable:$true] %s181
      %s183 = sshll.u32 %s4, 4
      %s184 = int_to_ptr.hbm [resolvable:$true] %s183
      %186 = dma.vmem_to_hbm [thread:$0]  %s182, 128, %s184, [#allocation3]
    $region25: #{tpu_custom_call.1} parent=1 // pred_fallthru
      _
    // Predicated region
    $region26: #{tpu_custom_call.1} parent=1 // pred_check
      _
    $region27: #{tpu_custom_call.1} parent=1 // pred_check_branch
      %188 = sbr.rel (0) target = $region29
    $region28: #{tpu_custom_call.1} parent=1 // pred_region
      %190 = dma.done [#allocation3], 128
    $region29: #{tpu_custom_call.1} parent=1 // pred_fallthru
      _
    %191 = vsyncpa [#allocation3], 1
    %192 = vsyncpa [#allocation4], 1

</llo_original>
